<compile_context>
chip_gen: v7x
topology: tpu7x:2x2x1
jax: 0.10.0
libtpu: 0.0.40
codegen_flags: <defaults>
</compile_context>

<pallas_src>
import functools

import jax
import jax.numpy as jnp
from jax.experimental import pallas as pl
from jax.experimental.pallas import tpu as pltpu


def _round_up(x, m):
    return ((x + m - 1) // m) * m


def _largest_tile(padded_dim, cap, unit=128):
    """Largest multiple of `unit` that exactly divides `padded_dim` and is <= cap."""
    m = padded_dim // unit
    g_cap = max(1, cap // unit)
    best = 1
    for g in range(1, min(m, g_cap) + 1):
        if m % g == 0:
            best = g
    return best * unit


def _vmem_budget():
    """(tile_budget_bytes, vmem_limit_bytes) sized per chip."""
    try:
        cap = int(pltpu.get_tpu_info().vmem_capacity_bytes)
    except Exception:
        cap = 64 * 1024 * 1024          # conservative default (v7x per-TC VMEM)
    vmem_limit = int(cap * 0.85)        # ~109 MiB on v5e/v6e, ~54 MiB on v7x
    tile_budget = int(cap * 0.70)       # headroom for Pallas internal scratch
    return tile_budget, vmem_limit


def _linear_kernel(x_ref, w_ref, b_ref, o_ref, acc_ref, *, tk, x_resident):
    """out tile = x[i, :] @ W[:, j] + b[j], f32 accumulation over the k axis."""
    k = pl.program_id(2)

    # Initialize the accumulator with the broadcast bias (no epilogue add).
    @pl.when(k == 0)
    def _():
        acc_ref[...] = jnp.broadcast_to(
            b_ref[...].astype(jnp.float32), acc_ref.shape
        )

    if x_resident:
        # x is VMEM-resident for the whole (j, k) sweep of this M-tile; slice
        # the 128-aligned K chunk locally instead of re-streaming from HBM.
        k0 = pl.multiple_of(k * tk, 128)
        x_blk = x_ref[:, pl.ds(k0, tk)]
    else:
        x_blk = x_ref[...]

    acc_ref[...] += jnp.dot(x_blk, w_ref[...], preferred_element_type=jnp.float32)

    @pl.when(k == pl.num_programs(2) - 1)
    def _():
        o_ref[...] = acc_ref[...].astype(o_ref.dtype)


def pallas_linear_padded(x, w_padded, b_padded, n_valid, *, out_dtype=jnp.float32):
    """x: (B, K); w_padded: (Kp, Np) pre-padded compute-dtype weight;
    b_padded: (1, Np) f32.  Returns (B, n_valid) = x @ W[:K, :n_valid] + b."""
    B, K = x.shape
    Kp, Np = w_padded.shape
    assert b_padded.shape == (1, Np)
    assert Kp == _round_up(K, 128) and Np >= n_valid

    tile_budget, vmem_limit = _vmem_budget()

    x_bytes = jnp.dtype(w_padded.dtype).itemsize     # x cast to compute dtype
    w_bytes = jnp.dtype(w_padded.dtype).itemsize
    out_bytes = jnp.dtype(out_dtype).itemsize

    # Weight tiles >= ~2-4 MiB to amortize the ~0.35us/grid-step overhead;
    # exact divisors of the pre-padded dims so nothing extra is streamed.
    tk = _largest_tile(Kp, 2048)
    tn = _largest_tile(Np, 1024)
    w_bufs = 3 if (Kp // tk) >= 3 else 2              # deeper buffering on long K loops

    fixed = w_bufs * tk * tn * w_bytes + 2 * tn * 4   # weight + bias buffers

    def _vmem_need(tm, resident):
        x_need = 2 * tm * (Kp if resident else tk) * x_bytes   # double-buffered x
        return fixed + x_need + 2 * tm * tn * out_bytes + tm * tn * 4

    def _fit_tm(resident):
        tm = _round_up(B, 8)
        while tm > 8 and _vmem_need(tm, resident) > tile_budget:
            tm = _round_up(tm // 2, 8)
        return tm if _vmem_need(tm, resident) <= tile_budget else None

    # Prefer tm covering the whole batch (weight streamed exactly once) with a
    # full-K-resident x block; fall back to a K-tiled x stream if VMEM-bound.
    tm = _fit_tm(True)
    x_resident = tm is not None
    if not x_resident:
        tm = _fit_tm(False) or 8

    Bp = _round_up(B, tm)

    x = x.astype(w_padded.dtype)
    pr, pc = Bp - B, Kp - K
    if pr or pc:
        x = jnp.pad(x, ((0, pr), (0, pc)))            # zero K-pad is a no-op in the dot

    grid = (Bp // tm, Np // tn, Kp // tk)

    if x_resident:
        x_spec = pl.BlockSpec((tm, Kp), lambda i, j, k: (i, 0))
    else:
        x_spec = pl.BlockSpec((tm, tk), lambda i, j, k: (i, k))

    w_kwargs = {}
    if w_bufs == 3:
        w_kwargs["pipeline_mode"] = pl.Buffered(3)
    w_spec = pl.BlockSpec((tk, tn), lambda i, j, k: (k, j), **w_kwargs)

    m_steps, n_steps = Bp // tm, Np // tn
    x_stream = Bp * Kp * x_bytes * (1 if x_resident else n_steps)
    cost = pl.CostEstimate(
        flops=2 * Bp * Kp * Np,
        transcendentals=0,
        bytes_accessed=(m_steps * Kp * Np * w_bytes    # weight re-stream per M tile
                        + x_stream
                        + m_steps * Np * 4             # bias
                        + Bp * Np * out_bytes),
    )

    out = pl.pallas_call(
        functools.partial(_linear_kernel, tk=tk, x_resident=x_resident),
        out_shape=jax.ShapeDtypeStruct((Bp, Np), out_dtype),
        grid_spec=pltpu.PrefetchScalarGridSpec(
            num_scalar_prefetch=0,
            grid=grid,
            in_specs=[
                x_spec,                                          # activations
                w_spec,                                          # streamed weight tile
                pl.BlockSpec((1, tn), lambda i, j, k: (0, j)),   # bias tile
            ],
            out_specs=pl.BlockSpec((tm, tn), lambda i, j, k: (i, j)),
            scratch_shapes=[pltpu.VMEM((tm, tn), jnp.float32)],
        ),
        compiler_params=pltpu.CompilerParams(
            dimension_semantics=("parallel", "parallel", "arbitrary"),
            vmem_limit_bytes=vmem_limit,
        ),
        cost_estimate=cost,
    )(x, w_padded, b_padded)

    if Bp == B and Np == n_valid:
        return out
    return out[:B, :n_valid]


class TokenalizeMutifeaturePallas:
    """JAX/Pallas port of Tokenalize_Mutifeature (use_se=False)."""

    def __init__(self, vocab_size, input_dim, feature_dim, embed_dim=512, *, key,
                 compute_dtype=jnp.bfloat16):
        self.vocab_size = vocab_size
        self.input_dim = input_dim
        self.feature_dim = feature_dim
        self.embed_dim = embed_dim
        self.compute_dtype = compute_dtype   # accuracy knob: jnp.float32 for strict parity

        in_features = vocab_size * input_dim * feature_dim
        out_features = vocab_size * embed_dim
        self.in_features = in_features
        self.out_features = out_features

        kw, kb = jax.random.split(key)
        # Deterministic init mimicking nn.Linear's uniform(-1/sqrt(fan_in), ...).
        bound = 1.0 / (in_features ** 0.5)
        w_t = jax.random.uniform(kw, (in_features, out_features), jnp.float32,
                                 -bound, bound)
        b = jax.random.uniform(kb, (out_features,), jnp.float32, -bound, bound)

        # Pad once at init (to 128 multiples) and pre-cast the streamed weight:
        # removes the per-call pad traffic and halves the dominant HBM stream.
        Kp = _round_up(in_features, 128)
        Np = _round_up(out_features, 128)
        w_t = w_t.astype(compute_dtype)
        self.weight_padded = jnp.pad(
            w_t, ((0, Kp - in_features), (0, Np - out_features)))
        self.bias_padded = jnp.pad(
            b, (0, Np - out_features)).reshape(1, Np).astype(jnp.float32)

    def __call__(self, x):
        # NoSEBlock (use_se=False) == identity.
        B = x.shape[0]
        x_flat = x.reshape(B, -1)                       # glue: plain JAX
        out = pallas_linear_padded(
            x_flat, self.weight_padded, self.bias_padded, self.out_features)
        return out.reshape(B, self.vocab_size, self.embed_dim)


def _reference(x, module):
    """Pure-JAX reference using the same compute-dtype weights / f32 accumulation."""
    B = x.shape[0]
    x_flat = x.reshape(B, -1).astype(module.weight_padded.dtype)
    w = module.weight_padded[:module.in_features, :module.out_features]
    b = module.bias_padded[0, :module.out_features]
    out = jnp.dot(x_flat, w, preferred_element_type=jnp.float32) + b
    return out.reshape(B, module.vocab_size, module.embed_dim)


if __name__ == "__main__":
    # Small shapes: K = V*I*F = 8*4*4 = 128, N = V*E = 8*32 = 256.
    B, V, I, F, E = 2, 8, 4, 4, 32

    key = jax.random.PRNGKey(0)
    k_x, k_params = jax.random.split(key)

    x = jax.random.normal(k_x, (B, V, I, F), jnp.float32)

    module = TokenalizeMutifeaturePallas(
        vocab_size=V, input_dim=I, feature_dim=F, embed_dim=E, key=k_params
    )

    out = jax.block_until_ready(module(x))
    assert out.shape == (B, V, E), out.shape

    ref = _reference(x, module)
    max_err = float(jnp.max(jnp.abs(out - ref)))
    assert jnp.allclose(out, ref, atol=5e-3, rtol=5e-3), max_err

    print("KERNEL_OK")
</pallas_src>

<mosaic_0001>
module attributes {stable_mosaic.version = 11 : i64} {
  func.func @_linear_kernel(%arg0: i32, %arg1: i32, %arg2: i32, %arg3: memref<8x128xbf16, #tpu.memory_space<vmem>>, %arg4: memref<128x256xbf16, #tpu.memory_space<vmem>>, %arg5: memref<1x256xf32, #tpu.memory_space<vmem>>, %arg6: memref<8x256xf32, #tpu.memory_space<vmem>>, %arg7: memref<8x256xf32, #tpu.memory_space<vmem>>) attributes {dimension_semantics = [#tpu.dimension_semantics<parallel>, #tpu.dimension_semantics<parallel>, #tpu.dimension_semantics<arbitrary>], iteration_bounds = array<i64: 1, 1, 1>, scalar_prefetch = 0 : i64, scratch_operands = 1 : i64, tpu.core_type = #tpu.core_type<tc>, window_params = [{transform_indices = @transform_0, window_bounds = array<i64: 8, 128>}, {transform_indices = @transform_1, window_bounds = array<i64: 128, 256>}, {transform_indices = @transform_2, window_bounds = array<i64: 1, 256>}, {transform_indices = @transform_3, window_bounds = array<i64: 8, 256>}]} {
    %c0_i32 = arith.constant 0 : i32
    %0 = arith.cmpi eq, %arg2, %c0_i32 : i32
    %1 = arith.extui %0 : i1 to i32
    %c0_i32_0 = arith.constant 0 : i32
    %2 = arith.cmpi ne, %1, %c0_i32_0 : i32
    scf.if %2 {
      %c0_9 = arith.constant 0 : index
      %c0_10 = arith.constant 0 : index
      %15 = vector.load %arg5[%c0_9, %c0_10] : memref<1x256xf32, #tpu.memory_space<vmem>>, vector<1x256xf32>
      %16 = vector.shape_cast %15 : vector<1x256xf32> to vector<1x256xf32>
      %17 = vector.broadcast %16 : vector<1x256xf32> to vector<8x256xf32>
      %c0_11 = arith.constant 0 : index
      %c0_12 = arith.constant 0 : index
      %18 = vector.load %arg7[%c0_11, %c0_12] : memref<8x256xf32, #tpu.memory_space<vmem>>, vector<8x256xf32>
      tpu.vector_store %arg7[%c0_11, %c0_12], %17 {strides = array<i32>} : memref<8x256xf32, #tpu.memory_space<vmem>>, vector<8x256xf32>,
    } else {
    }
    %c128_i32 = arith.constant 128 : i32
    %3 = arith.muli %arg2, %c128_i32 : i32
    %4 = tpu.assume_multiple %3, 128 : i32
    %c0 = arith.constant 0 : index
    %5 = arith.index_cast %4 : i32 to index
    %6 = vector.load %arg3[%c0, %5] : memref<8x128xbf16, #tpu.memory_space<vmem>>, vector<8x128xbf16>
    %c0_1 = arith.constant 0 : index
    %c0_2 = arith.constant 0 : index
    %7 = vector.load %arg7[%c0_1, %c0_2] : memref<8x256xf32, #tpu.memory_space<vmem>>, vector<8x256xf32>
    %c0_3 = arith.constant 0 : index
    %c0_4 = arith.constant 0 : index
    %8 = vector.load %arg4[%c0_3, %c0_4] : memref<128x256xbf16, #tpu.memory_space<vmem>>, vector<128x256xbf16>
    %cst = arith.constant dense<0.000000e+00> : vector<8x256xf32>
    %9 = tpu.matmul %6, %8, %cst {dimension_numbers = #tpu.dot_dimension_numbers<[1], [0], [0], [1], [0, 0, 1, 1], [], []>} : vector<8x128xbf16>, vector<128x256xbf16>, vector<8x256xf32> -> vector<8x256xf32>
    %10 = arith.addf %7, %9 : vector<8x256xf32>
    %c0_5 = arith.constant 0 : index
    %c0_6 = arith.constant 0 : index
    %11 = vector.load %arg7[%c0_5, %c0_6] : memref<8x256xf32, #tpu.memory_space<vmem>>, vector<8x256xf32>
    tpu.vector_store %arg7[%c0_5, %c0_6], %10 {strides = array<i32>} : memref<8x256xf32, #tpu.memory_space<vmem>>, vector<8x256xf32>,
    %c0_i32_7 = arith.constant 0 : i32
    %12 = arith.cmpi eq, %arg2, %c0_i32_7 : i32
    %13 = arith.extui %12 : i1 to i32
    %c0_i32_8 = arith.constant 0 : i32
    %14 = arith.cmpi ne, %13, %c0_i32_8 : i32
    scf.if %14 {
      %c0_9 = arith.constant 0 : index
      %c0_10 = arith.constant 0 : index
      %15 = vector.load %arg7[%c0_9, %c0_10] : memref<8x256xf32, #tpu.memory_space<vmem>>, vector<8x256xf32>
      %c0_11 = arith.constant 0 : index
      %c0_12 = arith.constant 0 : index
      %16 = vector.load %arg6[%c0_11, %c0_12] : memref<8x256xf32, #tpu.memory_space<vmem>>, vector<8x256xf32>
      tpu.vector_store %arg6[%c0_11, %c0_12], %15 {strides = array<i32>} : memref<8x256xf32, #tpu.memory_space<vmem>>, vector<8x256xf32>,
    } else {
    }
    return
  }
  func.func @transform_0(%arg0: i32, %arg1: i32, %arg2: i32) -> (i32, i32) {
    %c0_i32 = arith.constant 0 : i32
    %c0_i32_0 = arith.constant 0 : i32
    return %arg0, %c0_i32 : i32, i32
  }
  func.func @transform_1(%arg0: i32, %arg1: i32, %arg2: i32) -> (i32, i32) {
    %c0_i32 = arith.constant 0 : i32
    return %arg2, %arg1 : i32, i32
  }
  func.func @transform_2(%arg0: i32, %arg1: i32, %arg2: i32) -> (i32, i32) {
    %c0_i32 = arith.constant 0 : i32
    %c0_i32_0 = arith.constant 0 : i32
    return %c0_i32, %arg1 : i32, i32
  }
  func.func @transform_3(%arg0: i32, %arg1: i32, %arg2: i32) -> (i32, i32) {
    %c0_i32 = arith.constant 0 : i32
    return %arg0, %arg1 : i32, i32
  }
}

</mosaic_0001>

<llo_original>
// kernel: tpu_custom_call.1
$region0: #{tpu_custom_call.1}
  #allocation0 [shape = 'u32[]', space=smem, size = 0x4, offset = 0x4, fixed_abs, tag = 'smem constant byte address 0x4 - core index']
  #allocation1 [shape = 'u32[144,128]{1,0:T(1,128)}', space=vmem, size = 0x12000, scoped, tag = 'internal scratch']
  #allocation2 [shape = 'f32[8,256]{1,0:T(8,128)}', space=vmem, size = 0x2000, scoped, tag = 'scratch operand']
  %s0 = inlined_call_operand.hbm [shape: bf16[8,128], index: 0, kind: input, shape index: {}]
  %s1 = inlined_call_operand.hbm [shape: bf16[128,256], index: 1, kind: input, shape index: {}]
  %s2 = inlined_call_operand.vmem [shape: f32[1,256], index: 2, kind: input, shape index: {}]
  %s3 = inlined_call_operand.hbm [shape: f32[8,256], index: 3, kind: output, shape index: {}]
  %s4 = sld [smem:[#allocation0]]
  $region38: #{tpu_custom_call.1} parent=0
    _
  %s6 = ssub.s32 1, %s4
  %s7 = scalar_select 0, %s6, %s4
  $region1: #{tpu_custom_call.1} parent=0
    #allocation3 [shape = 'u8[2048]{0}', space=vmem, size = 0x800, scoped, tag = 'input window, operand 0, single buffered']
    #allocation4 [shape = 's32[1]{0}', space=sflag, size = 0x4, scoped, tag = 'scoped memory for tpu_custom_call.1']
    #allocation5 [shape = 's32[1]{0}', space=sflag, size = 0x4, scoped, tag = 'scoped memory for tpu_custom_call.1']
    #allocation6 [shape = 'u8[65536]{0}', space=vmem, size = 0x10000, scoped, tag = 'input window, operand 1, single buffered']
    #allocation7 [shape = 's32[1]{0}', space=sflag, size = 0x4, scoped, tag = 'scoped memory for tpu_custom_call.1']
    #allocation8 [shape = 'u8[8192]{0}', space=vmem, size = 0x2000, scoped, tag = 'output window, operand 0, single buffered']
    %8 = vsyncpa [#allocation4], 0
    %9 = vsyncpa [#allocation7], 0
    %10 = vsyncpa [#allocation5], 0
    // Predicated region
    $region2: #{tpu_custom_call.1} parent=1 // pred_check
      _
    $region3: #{tpu_custom_call.1} parent=1 // pred_check_branch
      %12 = sbr.rel (0) target = $region5
    $region4: #{tpu_custom_call.1} parent=1 // pred_region
      %s14 = ssub.s32 64, 64
      %15 = vsyncadd [#allocation4], %s14
      %s17 = sshll.u32 [#allocation3], 4
      %s18 = int_to_ptr.vmem [resolvable:$true] %s17
      %20 = dma.hbm_to_vmem [thread:$0]  %s0, 64, %s18, [#allocation4]
    $region5: #{tpu_custom_call.1} parent=1 // pred_fallthru
      _
    // Predicated region
    $region6: #{tpu_custom_call.1} parent=1 // pred_check
      _
    $region7: #{tpu_custom_call.1} parent=1 // pred_check_branch
      %22 = sbr.rel (0) target = $region9
    $region8: #{tpu_custom_call.1} parent=1 // pred_region
      %s24 = ssub.s32 2048, 2048
      %25 = vsyncadd [#allocation7], %s24
      %s26 = sshll.u32 [#allocation6], 4
      %s27 = int_to_ptr.vmem [resolvable:$true] %s26
      %32 = dma.hbm_to_vmem [thread:$0]  %s1, 2048, %s27, [#allocation7], 128, 128, 8
    $region9: #{tpu_custom_call.1} parent=1 // pred_fallthru
      _
    // Predicated region
    $region10: #{tpu_custom_call.1} parent=1 // pred_check
      _
    $region11: #{tpu_custom_call.1} parent=1 // pred_check_branch
      %34 = sbr.rel (0) target = $region13
    $region12: #{tpu_custom_call.1} parent=1 // pred_region
      _
    $region13: #{tpu_custom_call.1} parent=1 // pred_fallthru
      _
    // Predicated region
    $region14: #{tpu_custom_call.1} parent=1 // pred_check
      _
    $region15: #{tpu_custom_call.1} parent=1 // pred_check_branch
      %36 = sbr.rel (0) target = $region17
    $region16: #{tpu_custom_call.1} parent=1 // pred_region
      %37 = dma.done [#allocation4], 64
    $region17: #{tpu_custom_call.1} parent=1 // pred_fallthru
      _
    // Predicated region
    $region18: #{tpu_custom_call.1} parent=1 // pred_check
      _
    $region19: #{tpu_custom_call.1} parent=1 // pred_check_branch
      %39 = sbr.rel (0) target = $region21
    $region20: #{tpu_custom_call.1} parent=1 // pred_region
      %40 = dma.done [#allocation7], 2048
    $region21: #{tpu_custom_call.1} parent=1 // pred_fallthru
      _
    %p42 = scmp.eq.s32.totalorder 0, 0
    // Predicated region
    $region22: #{tpu_custom_call.1} parent=1 // pred_check
      %p43 = pneg %p42
    $region23: #{tpu_custom_call.1} parent=1 // pred_check_branch
      %45 = sbr.rel (%p43) target = $region25
    $region24: #{tpu_custom_call.1} parent=1 // pred_region
      %v46 = vld [vmem:[%s2] sm:$0x3]
      %v48 = vlaneseq
      %v49 = vshrl.u32 %v48, 7
      %v50 = vsub.s32 0, %v49
      %v51 = vrot.slane %v46, %v50
      %v52 = vlaneseq
      %v53 = vshrl.u32 %v52, 7
      %v54 = vsub.s32 1, %v53
      %v55 = vrot.slane %v46, %v54
      %58 = vst [vmem:[#allocation2] sm:$0xff] %v51
      %59 = vst [vmem:[#allocation2 + $0x8] sm:$0xff] %v55
    $region25: #{tpu_custom_call.1} parent=1 // pred_fallthru
      _
    %s60 = smul.u32 0, 128
    %s61 = sshra.s32 %s60, 7
    %s62 = sand.u32 %s60, 127
    %s63 = smul.addr %s61, 4
    %s64 = scalar_lea.vmem [#allocation3], %s63
    %v65 = vld [vmem:[%s64] sm:$0xf]
    %v66 = vld [vmem:[#allocation2] sm:$0xff]
    %v67 = vld [vmem:[#allocation2 + $0x8] sm:$0xff]
    %v68 = vld [vmem:[#allocation6] sm:$0xff]
    %v69 = vld [vmem:[#allocation6 + $0x8] sm:$0xff]
    %v70 = vld [vmem:[#allocation6 + $0x10] sm:$0xff]
    %v71 = vld [vmem:[#allocation6 + $0x18] sm:$0xff]
    %v72 = vld [vmem:[#allocation6 + $0x20] sm:$0xff]
    %v73 = vld [vmem:[#allocation6 + $0x28] sm:$0xff]
    %v74 = vld [vmem:[#allocation6 + $0x30] sm:$0xff]
    %v75 = vld [vmem:[#allocation6 + $0x38] sm:$0xff]
    %v76 = vld [vmem:[#allocation6 + $0x40] sm:$0xff]
    %v77 = vld [vmem:[#allocation6 + $0x48] sm:$0xff]
    %v78 = vld [vmem:[#allocation6 + $0x50] sm:$0xff]
    %v79 = vld [vmem:[#allocation6 + $0x58] sm:$0xff]
    %v80 = vld [vmem:[#allocation6 + $0x60] sm:$0xff]
    %v81 = vld [vmem:[#allocation6 + $0x68] sm:$0xff]
    %v82 = vld [vmem:[#allocation6 + $0x70] sm:$0xff]
    %v83 = vld [vmem:[#allocation6 + $0x78] sm:$0xff]
    %v100 = vunpack.c.l.b16 %v68
    %v101 = vunpack.c.h.b16 %v68
    %v102 = vunpack.c.l.b16 %v69
    %v103 = vunpack.c.h.b16 %v69
    %v104 = vunpack.c.l.b16 %v70
    %v105 = vunpack.c.h.b16 %v70
    %v106 = vunpack.c.l.b16 %v71
    %v107 = vunpack.c.h.b16 %v71
    %v108 = vunpack.c.l.b16 %v72
    %v109 = vunpack.c.h.b16 %v72
    %v110 = vunpack.c.l.b16 %v73
    %v111 = vunpack.c.h.b16 %v73
    %v112 = vunpack.c.l.b16 %v74
    %v113 = vunpack.c.h.b16 %v74
    %v114 = vunpack.c.l.b16 %v75
    %v115 = vunpack.c.h.b16 %v75
    %v116 = vunpack.c.l.b16 %v76
    %v117 = vunpack.c.h.b16 %v76
    %v118 = vunpack.c.l.b16 %v77
    %v119 = vunpack.c.h.b16 %v77
    %v120 = vunpack.c.l.b16 %v78
    %v121 = vunpack.c.h.b16 %v78
    %v122 = vunpack.c.l.b16 %v79
    %v123 = vunpack.c.h.b16 %v79
    %v124 = vunpack.c.l.b16 %v80
    %v125 = vunpack.c.h.b16 %v80
    %v126 = vunpack.c.l.b16 %v81
    %v127 = vunpack.c.h.b16 %v81
    %v128 = vunpack.c.l.b16 %v82
    %v129 = vunpack.c.h.b16 %v82
    %v130 = vunpack.c.l.b16 %v83
    %v131 = vunpack.c.h.b16 %v83
    %v132 = vpack.c.b16 %v102, %v100
    %v133 = vpack.c.b16 %v103, %v101
    %v134 = vpack.c.b16 %v106, %v104
    %v135 = vpack.c.b16 %v107, %v105
    %v136 = vpack.c.b16 %v110, %v108
    %v137 = vpack.c.b16 %v111, %v109
    %v138 = vpack.c.b16 %v114, %v112
    %v139 = vpack.c.b16 %v115, %v113
    %v140 = vpack.c.b16 %v118, %v116
    %v141 = vpack.c.b16 %v119, %v117
    %v142 = vpack.c.b16 %v122, %v120
    %v143 = vpack.c.b16 %v123, %v121
    %v144 = vpack.c.b16 %v126, %v124
    %v145 = vpack.c.b16 %v127, %v125
    %v146 = vpack.c.b16 %v130, %v128
    %v147 = vpack.c.b16 %v131, %v129
    %164 = vmatprep.subr.bf16.mxu0 %v133
    %165 = vmatpush1.bf16.msra.mxu0 %v132
    %166 = vmatprep.subr.bf16.mxu0 %v135
    %167 = vmatpush1.bf16.msra.mxu0 %v134
    %168 = vmatprep.subr.bf16.mxu0 %v137
    %169 = vmatpush1.bf16.msra.mxu0 %v136
    %170 = vmatprep.subr.bf16.mxu0 %v139
    %171 = vmatpush1.bf16.msra.mxu0 %v138
    %172 = vmatprep.subr.bf16.mxu0 %v141
    %173 = vmatpush1.bf16.msra.mxu0 %v140
    %174 = vmatprep.subr.bf16.mxu0 %v143
    %175 = vmatpush1.bf16.msra.mxu0 %v142
    %176 = vmatprep.subr.bf16.mxu0 %v145
    %177 = vmatpush1.bf16.msra.mxu0 %v144
    %178 = vmatprep.subr.bf16.mxu0 %v147
    %179 = vmatpush1.bf16.msra.mxu0 %v146
    %180 = vmatprep.subr.bf16.mxu0 0
    %181 = vmatpush1.bf16.msra.mxu0 0
    %182 = vmatprep.subr.bf16.mxu0 0
    %183 = vmatpush1.bf16.msra.mxu0 0
    %184 = vmatprep.subr.bf16.mxu0 0
    %185 = vmatpush1.bf16.msra.mxu0 0
    %186 = vmatprep.subr.bf16.mxu0 0
    %187 = vmatpush1.bf16.msra.mxu0 0
    %188 = vmatprep.subr.bf16.mxu0 0
    %189 = vmatpush1.bf16.msra.mxu0 0
    %190 = vmatprep.subr.bf16.mxu0 0
    %191 = vmatpush1.bf16.msra.mxu0 0
    %192 = vmatprep.subr.bf16.mxu0 0
    %193 = vmatpush1.bf16.msra.mxu0 0
    %194 = vmatprep.subr.bf16.mxu0 0
    %195 = vmatpush1.bf16.msra.mxu0 0
    %196 = vmatprep.mubr.bf16.mxu0 0
    %197 = vmatmul.mubr.bf16.gmra.mrb[0].mxu0 %v65
    %v198 = vpop.f32.mrb[0].mxu0
    %v199 = vadd.f32 0.0, %v198
    %v200 = vpop.f32.mrb[0].mxu0
    %v201 = vadd.f32 0.0, %v200
    %v202 = vpop.f32.mrb[0].mxu0
    %v203 = vpop.f32.mrb[0].mxu0
    %204 = vdwg.mxu0
    %v205 = vadd.f32 %v66, %v199
    %v206 = vadd.f32 %v67, %v201
    %207 = vst [vmem:[#allocation2] sm:$0xff] %v205
    %208 = vst [vmem:[#allocation2 + $0x8] sm:$0xff] %v206
    // Predicated region
    $region26: #{tpu_custom_call.1} parent=1 // pred_check
      %p209 = pneg %p42
    $region27: #{tpu_custom_call.1} parent=1 // pred_check_branch
      %211 = sbr.rel (%p209) target = $region29
    $region28: #{tpu_custom_call.1} parent=1 // pred_region
      %v212 = vld [vmem:[#allocation2] sm:$0xff]
      %v213 = vld [vmem:[#allocation2 + $0x8] sm:$0xff]
      %214 = vst [vmem:[#allocation8] sm:$0xff] %v212
      %215 = vst [vmem:[#allocation8 + $0x8] sm:$0xff] %v213
    $region29: #{tpu_custom_call.1} parent=1 // pred_fallthru
      _
    // Predicated region
    $region30: #{tpu_custom_call.1} parent=1 // pred_check
      _
    $region31: #{tpu_custom_call.1} parent=1 // pred_check_branch
      %217 = sbr.rel (0) target = $region33
    $region32: #{tpu_custom_call.1} parent=1 // pred_region
      %s219 = ssub.s32 256, 256
      %220 = vsyncadd [#allocation5], %s219
      %s222 = sshll.u32 [#allocation8], 4
      %s223 = int_to_ptr.vmem [resolvable:$true] %s222
      %225 = dma.vmem_to_hbm [thread:$0]  %s223, 256, %s3, [#allocation5]
    $region33: #{tpu_custom_call.1} parent=1 // pred_fallthru
      _
    // Predicated region
    $region34: #{tpu_custom_call.1} parent=1 // pred_check
      _
    $region35: #{tpu_custom_call.1} parent=1 // pred_check_branch
      %227 = sbr.rel (0) target = $region37
    $region36: #{tpu_custom_call.1} parent=1 // pred_region
      %228 = dma.done [#allocation5], 256
    $region37: #{tpu_custom_call.1} parent=1 // pred_fallthru
      _
    %229 = vsyncpa [#allocation4], 1
    %230 = vsyncpa [#allocation7], 1
    %231 = vsyncpa [#allocation5], 1

</llo_original>
